<compile_context>
chip_gen: v5e
topology: v5e:2x2
jax: 0.10.0
libtpu: 0.0.40
codegen_flags: <defaults>
</compile_context>

<pallas_src>
import numpy as np
import jax
import jax.numpy as jnp
from jax import lax
from jax.experimental import pallas as pl
from jax.experimental.pallas import tpu as pltpu


_DMA_RING = 16  # row DMAs kept in flight per grid step (review: raise 8 -> 16-32)


def _next_pow2(n):
    return 1 if n <= 1 else 1 << (int(n) - 1).bit_length()


# --------------------------------------------------------------------------------------
# shared phase: overwrite the (rare) textual-inversion fix rows
# --------------------------------------------------------------------------------------
def _apply_fixes(fdst_ref, fsrc_ref, nfix_ref, fixvecs_ref, out_ref, slot):
    # fdst/fsrc are flat (num_slots * MAXF,), nfix is (num_slots,); MAXF is static.
    maxf = fdst_ref.shape[0] // nfix_ref.shape[0]
    fbase = slot * maxf

    def body(i, carry):
        dst = fdst_ref[fbase + i]          # row inside this (batch, seq-chunk) tile
        src = fsrc_ref[fbase + i]          # row inside the small VMEM fix-vector table
        out_ref[pl.ds(dst, 1), :] = fixvecs_ref[pl.ds(src, 1), :]
        return carry

    lax.fori_loop(0, nfix_ref[slot], body, 0)   # trip count = actual #fix rows


# --------------------------------------------------------------------------------------
# HBM path: table stays in HBM, manual row-DMA gather with deep ring + token dedup
# --------------------------------------------------------------------------------------
def _embeddings_hbm_kernel(ids_ref, fdst_ref, fsrc_ref, nfix_ref,
                           table_hbm, fixvecs_ref, out_ref, sems):
    # ids_ref  : SMEM (B*S,) int32   token ids (flattened)
    # fdst_ref : SMEM (B*NC*MAXF,)   fix destination rows (chunk-local)
    # fsrc_ref : SMEM (B*NC*MAXF,)   fix source rows into fixvecs
    # nfix_ref : SMEM (B*NC,)        number of fix rows per (batch, chunk)
    # table_hbm: HBM  (V, H)         vocab embedding table (never copied to VMEM)
    # fixvecs  : VMEM (F, H)         stacked fix vectors (small)
    # out_ref  : VMEM (SC, H)        output rows for this (batch, chunk)
    # sems     : DMA semaphores (nsem,)
    b = pl.program_id(0)
    c = pl.program_id(1)
    NC = pl.num_programs(1)
    SC, _ = out_ref.shape
    V = table_hbm.shape[0]
    nsem = sems.shape[0]
    slot = b * NC + c
    base = slot * SC                        # offset into the flat (B*S,) id table

    def start_row(s, tok):
        pltpu.make_async_copy(table_hbm.at[pl.ds(tok, 1), :],
                              out_ref.at[pl.ds(s, 1), :],
                              sems.at[s % nsem]).start()

    def wait_row(s):
        # NOTE: the wait descriptor is rebuilt with src row 0 -- only the (1, H) shape
        # matters for the wait; keep it in sync with start_row if the row granularity
        # ever changes.
        pltpu.make_async_copy(table_hbm.at[pl.ds(0, 1), :],
                              out_ref.at[pl.ds(s, 1), :],
                              sems.at[s % nsem]).wait()

    # ---- phase 1: gather unique vocab rows HBM -> output tile (ring of row DMAs) -----
    for s in range(min(nsem, SC)):          # static priming of the ring
        # TODO(synk): OOB token ids are clipped (guards the HBM DMA); PyTorch would
        # raise an indexing error instead.
        tok = jnp.clip(ids_ref[base + s], 0, V - 1)
        if s == 0:
            start_row(s, tok)
        else:
            @pl.when(ids_ref[base + s] != ids_ref[base + s - 1])   # skip duplicate rows
            def _(s=s, tok=tok):
                start_row(s, tok)

    def gather_body(s, carry):
        # Hoist ALL SMEM scalar reads above the DMA wait (.wait() breaks sst->sld
        # forwarding and would stall the scalar core every iteration).
        prev = jnp.maximum(s - 1, 0)
        dup_cur = jnp.logical_and(s > 0, ids_ref[base + s] == ids_ref[base + prev])
        nxt = jnp.minimum(s + nsem, SC - 1)                        # clamped; guarded below
        tok_next = jnp.clip(ids_ref[base + nxt], 0, V - 1)
        dup_next = ids_ref[base + nxt] == ids_ref[base + jnp.maximum(nxt - 1, 0)]
        do_next = jnp.logical_and(s + nsem < SC, jnp.logical_not(dup_next))

        @pl.when(jnp.logical_not(dup_cur))   # duplicate rows never had a DMA started
        def _():
            wait_row(s)

        @pl.when(do_next)
        def _():
            start_row(nxt, tok_next)
        return carry

    # Partial unroll: enough DMA issues visible to the scheduler without code bloat.
    lax.fori_loop(0, SC, gather_body, 0, unroll=min(8, SC))

    # ---- phase 2: fill duplicate-token rows with a forward VMEM->VMEM copy pass ------
    def dup_body(s, carry):
        @pl.when(ids_ref[base + s] == ids_ref[base + s - 1])
        def _():
            out_ref[pl.ds(s, 1), :] = out_ref[pl.ds(s - 1, 1), :]
        return carry

    lax.fori_loop(1, SC, dup_body, 0)       # sequential: chains of duplicates propagate

    # ---- phase 3: overwrite the (rare) textual-inversion fix rows ---------------------
    _apply_fixes(fdst_ref, fsrc_ref, nfix_ref, fixvecs_ref, out_ref, slot)


# --------------------------------------------------------------------------------------
# VMEM fast path: whole vocab table resident in VMEM, gather fully in-core (no DMAs)
# --------------------------------------------------------------------------------------
def _embeddings_vmem_kernel(ids_ref, fdst_ref, fsrc_ref, nfix_ref,
                            table_ref, fixvecs_ref, out_ref):
    b = pl.program_id(0)
    c = pl.program_id(1)
    NC = pl.num_programs(1)
    SC, _ = out_ref.shape
    V = table_ref.shape[0]
    slot = b * NC + c
    base = slot * SC

    # TODO(synk): a vectorized jnp.take gather on the VMEM table would remove the
    # scalar row loop entirely; per-row VMEM copies keep the lowering simple and are
    # already free of DMA-descriptor cost.
    def gather_body(s, carry):
        tok = jnp.clip(ids_ref[base + s], 0, V - 1)
        out_ref[pl.ds(s, 1), :] = table_ref[pl.ds(tok, 1), :]
        return carry

    lax.fori_loop(0, SC, gather_body, 0, unroll=min(8, SC))

    _apply_fixes(fdst_ref, fsrc_ref, nfix_ref, fixvecs_ref, out_ref, slot)


# --------------------------------------------------------------------------------------
# host-side glue
# --------------------------------------------------------------------------------------
def _build_fix_tables(batch_fixes, B, S, NC, H, dtype):
    """Bulk-numpy construction of the fix tables (single device transfer)."""
    SC = S // NC
    nslots = B * NC
    dst = [[] for _ in range(nslots)]
    src = [[] for _ in range(nslots)]
    blocks = []
    nrows = 0
    if batch_fixes is not None:
        for b, fixes in enumerate(batch_fixes):
            if fixes is None or len(fixes) == 0:      # tolerate per-batch None / empty
                continue
            for offset, vec in fixes:
                offset = int(offset)
                if offset < 0:
                    raise ValueError(
                        f"EmbeddingsWithFixes: negative fix offset {offset} not supported")
                v = np.asarray(vec, dtype=np.float32)
                if v.ndim != 2 or v.shape[1] != H:
                    raise ValueError(f"fix vector must have shape (L, {H}), got {v.shape}")
                emb_len = min(S - offset - 1, v.shape[0])
                if emb_len <= 0:
                    continue
                blocks.append(v[:emb_len])
                for j in range(emb_len):
                    g = offset + 1 + j                # global row in [0, S)
                    c = g // SC
                    slot = b * NC + c
                    dst[slot].append(g - c * SC)      # chunk-local destination row
                    src[slot].append(nrows + j)       # row into the stacked fix table
                nrows += emb_len

    # stable power-of-two buckets -> no recompiles when fix counts jitter
    maxf = _next_pow2(max(8, max((len(d) for d in dst), default=0)))
    fdst = np.zeros((nslots * maxf,), np.int32)
    fsrc = np.zeros((nslots * maxf,), np.int32)
    nfix = np.zeros((nslots,), np.int32)
    for slot in range(nslots):
        n = len(dst[slot])
        nfix[slot] = n
        if n:
            fdst[slot * maxf:slot * maxf + n] = dst[slot]
            fsrc[slot * maxf:slot * maxf + n] = src[slot]

    F = _next_pow2(max(8, nrows))
    rows = np.zeros((F, H), np.float32)
    if nrows:
        rows[:nrows] = np.concatenate(blocks, axis=0)
    fix_vecs = jnp.asarray(rows).astype(dtype)        # one bulk transfer + one cast
    return jnp.asarray(fdst), jnp.asarray(fsrc), jnp.asarray(nfix), fix_vecs


def embeddings_with_fixes(input_ids, embed_table, batch_fixes, *,
                          vmem_table_bytes_limit=12 * 1024 * 1024,
                          num_seq_chunks=None):
    """JAX wrapper reproducing EmbeddingsWithFixes.forward.

    input_ids   : (B, S) int32
    embed_table : (V, H) float   (the `wrapped` nn.Embedding weight)
    batch_fixes : list (len B) of lists of (offset:int, vec:(L, H)) -- entries may be
                  None/empty; whole argument may be None.
    returns     : (B, S, H) float
    """
    input_ids = jnp.asarray(input_ids, dtype=jnp.int32)
    embed_table = jnp.asarray(embed_table)
    B, S = input_ids.shape
    V, H = embed_table.shape
    dtype = embed_table.dtype
    itemsize = jnp.dtype(dtype).itemsize

    # Split S into chunks only when the (8,128) tiling constraint allows it; gives both
    # v7x TensorCores work even at B == 1 (no effect on single-TC v5e/v6e).
    if num_seq_chunks is None:
        num_seq_chunks = 2 if (S % 2 == 0 and (S // 2) % 8 == 0 and S >= 16) else 1
    NC = int(num_seq_chunks)
    assert S % NC == 0 and (NC == 1 or (S // NC) % 8 == 0)
    SC = S // NC

    fdst, fsrc, nfix, fix_vecs = _build_fix_tables(batch_fixes, B, S, NC, H, dtype)
    F = fix_vecs.shape[0]

    cost = pl.CostEstimate(flops=0, transcendentals=0,
                           bytes_accessed=2 * B * S * H * itemsize)
    out_shape = jax.ShapeDtypeStruct((B, S, H), dtype)
    out_spec = pl.BlockSpec((None, SC, H), lambda b, c, *_: (b, c, 0))
    fix_spec = pl.BlockSpec((F, H), lambda b, c, *_: (0, 0))
    scalar_args = (input_ids.reshape(-1), fdst, fsrc, nfix)

    table_bytes = V * H * itemsize
    if table_bytes <= vmem_table_bytes_limit:
        # -------- VMEM fast path: in-core gather, no DMA descriptors ------------------
        vmem_limit = max(int(2 * table_bytes + 4 * (SC * H + F * H) * itemsize)
                         + (4 << 20), 32 << 20)
        grid_spec = pltpu.PrefetchScalarGridSpec(
            num_scalar_prefetch=4, grid=(B, NC),
            in_specs=[pl.BlockSpec((V, H), lambda b, c, *_: (0, 0)),  # table -> VMEM
                      fix_spec],
            out_specs=out_spec)
        return pl.pallas_call(
            _embeddings_vmem_kernel,
            out_shape=out_shape,
            grid_spec=grid_spec,
            compiler_params=pltpu.CompilerParams(
                dimension_semantics=("parallel", "parallel"),
                vmem_limit_bytes=vmem_limit),
            cost_estimate=cost,
        )(*scalar_args, embed_table, fix_vecs)

    # -------- HBM path: row-DMA gather with deep ring + dedup (v7x-VMEM-safe) --------
    nsem = max(1, min(_DMA_RING, SC))
    grid_spec = pltpu.PrefetchScalarGridSpec(
        num_scalar_prefetch=4, grid=(B, NC),
        in_specs=[pl.BlockSpec(memory_space=pl.ANY),                  # table stays in HBM
                  fix_spec],
        out_specs=out_spec,
        scratch_shapes=[pltpu.SemaphoreType.DMA((nsem,))])
    return pl.pallas_call(
        _embeddings_hbm_kernel,
        out_shape=out_shape,
        grid_spec=grid_spec,
        compiler_params=pltpu.CompilerParams(
            dimension_semantics=("parallel", "parallel")),
        cost_estimate=cost,
    )(*scalar_args, embed_table, fix_vecs)


# --------------------------------------------------------------------------------------
# reference + self-test
# --------------------------------------------------------------------------------------
def _reference(input_ids, embed_table, batch_fixes):
    """Pure numpy reference matching the PyTorch forward."""
    table = np.asarray(embed_table)
    out = table[np.asarray(input_ids)].copy()
    S = out.shape[1]
    if batch_fixes is None:
        return out
    for b, fixes in enumerate(batch_fixes):
        if fixes is None:
            continue
        for offset, vec in fixes:
            vec = np.asarray(vec)
            emb_len = min(S - offset - 1, vec.shape[0])
            if emb_len > 0:
                out[b, offset + 1:offset + 1 + emb_len] = vec[:emb_len]
    return out


if __name__ == "__main__":
    # Small, deterministic synthetic setup.
    B, S, V, H = 2, 16, 64, 128
    key = jax.random.PRNGKey(0)
    k_tab, k_ids, k_f0, k_f1, k_f2 = jax.random.split(key, 5)

    embed_table = jax.random.normal(k_tab, (V, H), dtype=jnp.float32)
    input_ids = jax.random.randint(k_ids, (B, S), 0, V, dtype=jnp.int32)
    # padding/EOS-style duplicate run at the tail -> exercises the dedup path
    input_ids = input_ids.at[:, 11:].set(3)

    # embeddings.fixes: per-batch list of (offset, embedding.vec)
    fix0 = jax.random.normal(k_f0, (3, H), dtype=jnp.float32)     # fits
    fix1 = jax.random.normal(k_f1, (4, H), dtype=jnp.float32)     # fits
    fix2 = jax.random.normal(k_f2, (20, H), dtype=jnp.float32)    # truncated by emb_len
    batch_fixes = [
        [(2, np.asarray(fix0))],
        [(0, np.asarray(fix1)), (9, np.asarray(fix2))],
    ]
    # TODO(synk): the PyTorch module also mutates `self.embeddings.fixes = None`
    # (a Python-side side effect) which has no kernel equivalent and is omitted.

    ref = _reference(input_ids, embed_table, batch_fixes)

    # 1) VMEM fast path (table fits the budget at these sizes)
    out_fast = jax.block_until_ready(
        embeddings_with_fixes(input_ids, embed_table, batch_fixes))
    np.testing.assert_allclose(np.asarray(out_fast), ref, rtol=1e-6, atol=1e-6)

    # 2) HBM row-DMA gather path (force it by disallowing the VMEM-resident table)
    out_hbm = jax.block_until_ready(
        embeddings_with_fixes(input_ids, embed_table, batch_fixes,
                              vmem_table_bytes_limit=0))
    np.testing.assert_allclose(np.asarray(out_hbm), ref, rtol=1e-6, atol=1e-6)

    # 3) no fixes / per-batch None fixes
    out_none = jax.block_until_ready(
        embeddings_with_fixes(input_ids, embed_table, None, vmem_table_bytes_limit=0))
    np.testing.assert_allclose(np.asarray(out_none),
                               _reference(input_ids, embed_table, None),
                               rtol=1e-6, atol=1e-6)
    mixed = [None, [(5, np.asarray(fix0))]]
    out_mixed = jax.block_until_ready(
        embeddings_with_fixes(input_ids, embed_table, mixed))
    np.testing.assert_allclose(np.asarray(out_mixed),
                               _reference(input_ids, embed_table, mixed),
                               rtol=1e-6, atol=1e-6)

    # 4) sequence length that cannot be chunked (falls back to a single S chunk)
    ids12 = input_ids[:, :12]
    out12 = jax.block_until_ready(
        embeddings_with_fixes(ids12, embed_table, None, vmem_table_bytes_limit=0))
    np.testing.assert_allclose(np.asarray(out12),
                               _reference(ids12, embed_table, None),
                               rtol=1e-6, atol=1e-6)

    print("KERNEL_OK")
</pallas_src>

<mosaic_0001>
module attributes {stable_mosaic.version = 11 : i64} {
  func.func @_embeddings_vmem_kernel(%arg0: i32, %arg1: i32, %arg2: memref<32xi32, #tpu.memory_space<smem>>, %arg3: memref<32xi32, #tpu.memory_space<smem>>, %arg4: memref<32xi32, #tpu.memory_space<smem>>, %arg5: memref<4xi32, #tpu.memory_space<smem>>, %arg6: memref<64x128xf32, #tpu.memory_space<vmem>>, %arg7: memref<16x128xf32, #tpu.memory_space<vmem>>, %arg8: memref<1x8x128xf32, #tpu.memory_space<vmem>>) attributes {dimension_semantics = [#tpu.dimension_semantics<parallel>, #tpu.dimension_semantics<parallel>], iteration_bounds = array<i64: 2, 2>, scalar_prefetch = 4 : i64, scratch_operands = 0 : i64, tpu.core_type = #tpu.core_type<tc>, window_params = [{pipeline_mode = #tpu.pipeline_mode<synchronous>, transform_indices = @transform_0, window_bounds = array<i64: 64, 128>}, {pipeline_mode = #tpu.pipeline_mode<synchronous>, transform_indices = @transform_1, window_bounds = array<i64: 16, 128>}, {transform_indices = @transform_2, window_bounds = array<i64: 1, 8, 128>}]} {
    %c2_i32 = arith.constant 2 : i32
    %0 = arith.muli %arg0, %c2_i32 : i32
    %1 = arith.addi %0, %arg1 : i32
    %c8_i32 = arith.constant 8 : i32
    %2 = arith.muli %1, %c8_i32 : i32
    %c0_i32 = arith.constant 0 : i32
    %3 = arith.addi %2, %c0_i32 : i32
    %4 = arith.index_cast %3 : i32 to index
    %5 = memref.load %arg2[%4] : memref<32xi32, #tpu.memory_space<smem>>
    %c0_i32_0 = arith.constant 0 : i32
    %c63_i32 = arith.constant 63 : i32
    %6 = arith.maxsi %c0_i32_0, %5 : i32
    %7 = arith.minsi %c63_i32, %6 : i32
    %8 = arith.index_cast %7 : i32 to index
    %c0 = arith.constant 0 : index
    %9 = vector.load %arg6[%8, %c0] : memref<64x128xf32, #tpu.memory_space<vmem>>, vector<1x128xf32>
    %c0_1 = arith.constant 0 : index
    %10 = arith.index_cast %c0_i32 : i32 to index
    %c0_2 = arith.constant 0 : index
    %11 = vector.load %arg8[%c0_1, %10, %c0_2] : memref<1x8x128xf32, #tpu.memory_space<vmem>>, vector<1x1x128xf32>
    %12 = vector.shape_cast %11 : vector<1x1x128xf32> to vector<1x128xf32>
    %13 = vector.shape_cast %9 : vector<1x128xf32> to vector<1x1x128xf32>
    tpu.vector_store %arg8[%c0_1, %10, %c0_2], %13 {strides = array<i32>} : memref<1x8x128xf32, #tpu.memory_space<vmem>>, vector<1x1x128xf32>,
    %c1_i32 = arith.constant 1 : i32
    %14 = arith.addi %2, %c1_i32 : i32
    %15 = arith.index_cast %14 : i32 to index
    %16 = memref.load %arg2[%15] : memref<32xi32, #tpu.memory_space<smem>>
    %c0_i32_3 = arith.constant 0 : i32
    %c63_i32_4 = arith.constant 63 : i32
    %17 = arith.maxsi %c0_i32_3, %16 : i32
    %18 = arith.minsi %c63_i32_4, %17 : i32
    %19 = arith.index_cast %18 : i32 to index
    %c0_5 = arith.constant 0 : index
    %20 = vector.load %arg6[%19, %c0_5] : memref<64x128xf32, #tpu.memory_space<vmem>>, vector<1x128xf32>
    %c0_6 = arith.constant 0 : index
    %21 = arith.index_cast %c1_i32 : i32 to index
    %c0_7 = arith.constant 0 : index
    %22 = vector.load %arg8[%c0_6, %21, %c0_7] : memref<1x8x128xf32, #tpu.memory_space<vmem>>, vector<1x1x128xf32>
    %23 = vector.shape_cast %22 : vector<1x1x128xf32> to vector<1x128xf32>
    %24 = vector.shape_cast %20 : vector<1x128xf32> to vector<1x1x128xf32>
    tpu.vector_store %arg8[%c0_6, %21, %c0_7], %24 {strides = array<i32>} : memref<1x8x128xf32, #tpu.memory_space<vmem>>, vector<1x1x128xf32>,
    %c2_i32_8 = arith.constant 2 : i32
    %25 = arith.addi %2, %c2_i32_8 : i32
    %26 = arith.index_cast %25 : i32 to index
    %27 = memref.load %arg2[%26] : memref<32xi32, #tpu.memory_space<smem>>
    %c0_i32_9 = arith.constant 0 : i32
    %c63_i32_10 = arith.constant 63 : i32
    %28 = arith.maxsi %c0_i32_9, %27 : i32
    %29 = arith.minsi %c63_i32_10, %28 : i32
    %30 = arith.index_cast %29 : i32 to index
    %c0_11 = arith.constant 0 : index
    %31 = vector.load %arg6[%30, %c0_11] : memref<64x128xf32, #tpu.memory_space<vmem>>, vector<1x128xf32>
    %c0_12 = arith.constant 0 : index
    %32 = arith.index_cast %c2_i32_8 : i32 to index
    %c0_13 = arith.constant 0 : index
    %33 = vector.load %arg8[%c0_12, %32, %c0_13] : memref<1x8x128xf32, #tpu.memory_space<vmem>>, vector<1x1x128xf32>
    %34 = vector.shape_cast %33 : vector<1x1x128xf32> to vector<1x128xf32>
    %35 = vector.shape_cast %31 : vector<1x128xf32> to vector<1x1x128xf32>
    tpu.vector_store %arg8[%c0_12, %32, %c0_13], %35 {strides = array<i32>} : memref<1x8x128xf32, #tpu.memory_space<vmem>>, vector<1x1x128xf32>,
    %c3_i32 = arith.constant 3 : i32
    %36 = arith.addi %2, %c3_i32 : i32
    %37 = arith.index_cast %36 : i32 to index
    %38 = memref.load %arg2[%37] : memref<32xi32, #tpu.memory_space<smem>>
    %c0_i32_14 = arith.constant 0 : i32
    %c63_i32_15 = arith.constant 63 : i32
    %39 = arith.maxsi %c0_i32_14, %38 : i32
    %40 = arith.minsi %c63_i32_15, %39 : i32
    %41 = arith.index_cast %40 : i32 to index
    %c0_16 = arith.constant 0 : index
    %42 = vector.load %arg6[%41, %c0_16] : memref<64x128xf32, #tpu.memory_space<vmem>>, vector<1x128xf32>
    %c0_17 = arith.constant 0 : index
    %43 = arith.index_cast %c3_i32 : i32 to index
    %c0_18 = arith.constant 0 : index
    %44 = vector.load %arg8[%c0_17, %43, %c0_18] : memref<1x8x128xf32, #tpu.memory_space<vmem>>, vector<1x1x128xf32>
    %45 = vector.shape_cast %44 : vector<1x1x128xf32> to vector<1x128xf32>
    %46 = vector.shape_cast %42 : vector<1x128xf32> to vector<1x1x128xf32>
    tpu.vector_store %arg8[%c0_17, %43, %c0_18], %46 {strides = array<i32>} : memref<1x8x128xf32, #tpu.memory_space<vmem>>, vector<1x1x128xf32>,
    %c4_i32 = arith.constant 4 : i32
    %47 = arith.addi %2, %c4_i32 : i32
    %48 = arith.index_cast %47 : i32 to index
    %49 = memref.load %arg2[%48] : memref<32xi32, #tpu.memory_space<smem>>
    %c0_i32_19 = arith.constant 0 : i32
    %c63_i32_20 = arith.constant 63 : i32
    %50 = arith.maxsi %c0_i32_19, %49 : i32
    %51 = arith.minsi %c63_i32_20, %50 : i32
    %52 = arith.index_cast %51 : i32 to index
    %c0_21 = arith.constant 0 : index
    %53 = vector.load %arg6[%52, %c0_21] : memref<64x128xf32, #tpu.memory_space<vmem>>, vector<1x128xf32>
    %c0_22 = arith.constant 0 : index
    %54 = arith.index_cast %c4_i32 : i32 to index
    %c0_23 = arith.constant 0 : index
    %55 = vector.load %arg8[%c0_22, %54, %c0_23] : memref<1x8x128xf32, #tpu.memory_space<vmem>>, vector<1x1x128xf32>
    %56 = vector.shape_cast %55 : vector<1x1x128xf32> to vector<1x128xf32>
    %57 = vector.shape_cast %53 : vector<1x128xf32> to vector<1x1x128xf32>
    tpu.vector_store %arg8[%c0_22, %54, %c0_23], %57 {strides = array<i32>} : memref<1x8x128xf32, #tpu.memory_space<vmem>>, vector<1x1x128xf32>,
    %c5_i32 = arith.constant 5 : i32
    %58 = arith.addi %2, %c5_i32 : i32
    %59 = arith.index_cast %58 : i32 to index
    %60 = memref.load %arg2[%59] : memref<32xi32, #tpu.memory_space<smem>>
    %c0_i32_24 = arith.constant 0 : i32
    %c63_i32_25 = arith.constant 63 : i32
    %61 = arith.maxsi %c0_i32_24, %60 : i32
    %62 = arith.minsi %c63_i32_25, %61 : i32
    %63 = arith.index_cast %62 : i32 to index
    %c0_26 = arith.constant 0 : index
    %64 = vector.load %arg6[%63, %c0_26] : memref<64x128xf32, #tpu.memory_space<vmem>>, vector<1x128xf32>
    %c0_27 = arith.constant 0 : index
    %65 = arith.index_cast %c5_i32 : i32 to index
    %c0_28 = arith.constant 0 : index
    %66 = vector.load %arg8[%c0_27, %65, %c0_28] : memref<1x8x128xf32, #tpu.memory_space<vmem>>, vector<1x1x128xf32>
    %67 = vector.shape_cast %66 : vector<1x1x128xf32> to vector<1x128xf32>
    %68 = vector.shape_cast %64 : vector<1x128xf32> to vector<1x1x128xf32>
    tpu.vector_store %arg8[%c0_27, %65, %c0_28], %68 {strides = array<i32>} : memref<1x8x128xf32, #tpu.memory_space<vmem>>, vector<1x1x128xf32>,
    %c6_i32 = arith.constant 6 : i32
    %69 = arith.addi %2, %c6_i32 : i32
    %70 = arith.index_cast %69 : i32 to index
    %71 = memref.load %arg2[%70] : memref<32xi32, #tpu.memory_space<smem>>
    %c0_i32_29 = arith.constant 0 : i32
    %c63_i32_30 = arith.constant 63 : i32
    %72 = arith.maxsi %c0_i32_29, %71 : i32
    %73 = arith.minsi %c63_i32_30, %72 : i32
    %74 = arith.index_cast %73 : i32 to index
    %c0_31 = arith.constant 0 : index
    %75 = vector.load %arg6[%74, %c0_31] : memref<64x128xf32, #tpu.memory_space<vmem>>, vector<1x128xf32>
    %c0_32 = arith.constant 0 : index
    %76 = arith.index_cast %c6_i32 : i32 to index
    %c0_33 = arith.constant 0 : index
    %77 = vector.load %arg8[%c0_32, %76, %c0_33] : memref<1x8x128xf32, #tpu.memory_space<vmem>>, vector<1x1x128xf32>
    %78 = vector.shape_cast %77 : vector<1x1x128xf32> to vector<1x128xf32>
    %79 = vector.shape_cast %75 : vector<1x128xf32> to vector<1x1x128xf32>
    tpu.vector_store %arg8[%c0_32, %76, %c0_33], %79 {strides = array<i32>} : memref<1x8x128xf32, #tpu.memory_space<vmem>>, vector<1x1x128xf32>,
    %c7_i32 = arith.constant 7 : i32
    %80 = arith.addi %2, %c7_i32 : i32
    %81 = arith.index_cast %80 : i32 to index
    %82 = memref.load %arg2[%81] : memref<32xi32, #tpu.memory_space<smem>>
    %c0_i32_34 = arith.constant 0 : i32
    %c63_i32_35 = arith.constant 63 : i32
    %83 = arith.maxsi %c0_i32_34, %82 : i32
    %84 = arith.minsi %c63_i32_35, %83 : i32
    %85 = arith.index_cast %84 : i32 to index
    %c0_36 = arith.constant 0 : index
    %86 = vector.load %arg6[%85, %c0_36] : memref<64x128xf32, #tpu.memory_space<vmem>>, vector<1x128xf32>
    %c0_37 = arith.constant 0 : index
    %87 = arith.index_cast %c7_i32 : i32 to index
    %c0_38 = arith.constant 0 : index
    %88 = vector.load %arg8[%c0_37, %87, %c0_38] : memref<1x8x128xf32, #tpu.memory_space<vmem>>, vector<1x1x128xf32>
    %89 = vector.shape_cast %88 : vector<1x1x128xf32> to vector<1x128xf32>
    %90 = vector.shape_cast %86 : vector<1x128xf32> to vector<1x1x128xf32>
    tpu.vector_store %arg8[%c0_37, %87, %c0_38], %90 {strides = array<i32>} : memref<1x8x128xf32, #tpu.memory_space<vmem>>, vector<1x1x128xf32>,
    %c8_i32_39 = arith.constant 8 : i32
    %c8_i32_40 = arith.constant 8 : i32
    %91 = arith.muli %1, %c8_i32_40 : i32
    %92 = arith.index_cast %1 : i32 to index
    %93 = memref.load %arg5[%92] : memref<4xi32, #tpu.memory_space<smem>>
    %c0_i32_41 = arith.constant 0 : i32
    %c0_i32_42 = arith.constant 0 : i32
    %94 = arith.subi %93, %c0_i32_42 : i32
    %95 = arith.addi %c0_i32_42, %94 : i32
    %c1_i32_43 = arith.constant 1 : i32
    scf.for %arg9 = %c0_i32_42 to %95 step %c1_i32_43  : i32 {
      %96 = arith.addi %91, %arg9 : i32
      %97 = arith.index_cast %96 : i32 to index
      %98 = memref.load %arg3[%97] : memref<32xi32, #tpu.memory_space<smem>>
      %99 = arith.addi %91, %arg9 : i32
      %100 = arith.index_cast %99 : i32 to index
      %101 = memref.load %arg4[%100] : memref<32xi32, #tpu.memory_space<smem>>
      %102 = arith.index_cast %101 : i32 to index
      %c0_44 = arith.constant 0 : index
      %103 = vector.load %arg7[%102, %c0_44] : memref<16x128xf32, #tpu.memory_space<vmem>>, vector<1x128xf32>
      %c0_45 = arith.constant 0 : index
      %104 = arith.index_cast %98 : i32 to index
      %c0_46 = arith.constant 0 : index
      %105 = vector.load %arg8[%c0_45, %104, %c0_46] : memref<1x8x128xf32, #tpu.memory_space<vmem>>, vector<1x1x128xf32>
      %106 = vector.shape_cast %105 : vector<1x1x128xf32> to vector<1x128xf32>
      %107 = vector.shape_cast %103 : vector<1x128xf32> to vector<1x1x128xf32>
      tpu.vector_store %arg8[%c0_45, %104, %c0_46], %107 {strides = array<i32>} : memref<1x8x128xf32, #tpu.memory_space<vmem>>, vector<1x1x128xf32>,
    }
    return
  }
  func.func @transform_0(%arg0: i32, %arg1: i32, %arg2: memref<32xi32, #tpu.memory_space<smem>>, %arg3: memref<32xi32, #tpu.memory_space<smem>>, %arg4: memref<32xi32, #tpu.memory_space<smem>>, %arg5: memref<4xi32, #tpu.memory_space<smem>>) -> (i32, i32) {
    %c0_i32 = arith.constant 0 : i32
    %c0_i32_0 = arith.constant 0 : i32
    %c0_i32_1 = arith.constant 0 : i32
    return %c0_i32, %c0_i32_0 : i32, i32
  }
  func.func @transform_1(%arg0: i32, %arg1: i32, %arg2: memref<32xi32, #tpu.memory_space<smem>>, %arg3: memref<32xi32, #tpu.memory_space<smem>>, %arg4: memref<32xi32, #tpu.memory_space<smem>>, %arg5: memref<4xi32, #tpu.memory_space<smem>>) -> (i32, i32) {
    %c0_i32 = arith.constant 0 : i32
    %c0_i32_0 = arith.constant 0 : i32
    %c0_i32_1 = arith.constant 0 : i32
    return %c0_i32, %c0_i32_0 : i32, i32
  }
  func.func @transform_2(%arg0: i32, %arg1: i32, %arg2: memref<32xi32, #tpu.memory_space<smem>>, %arg3: memref<32xi32, #tpu.memory_space<smem>>, %arg4: memref<32xi32, #tpu.memory_space<smem>>, %arg5: memref<4xi32, #tpu.memory_space<smem>>) -> (i32, i32, i32) {
    %c0_i32 = arith.constant 0 : i32
    %c0_i32_0 = arith.constant 0 : i32
    return %arg0, %arg1, %c0_i32 : i32, i32, i32
  }
}

</mosaic_0001>

<llo_original>
// kernel: tpu_custom_call.1
$region0: #{tpu_custom_call.1}
  #allocation0 [shape = 'u32[]', space=smem, size = 0x4, offset = 0x4, fixed_abs, tag = 'smem constant byte address 0x4 - core index']
  #allocation1 [shape = 'u32[72,128]{1,0:T(1,128)}', space=vmem, size = 0x9000, scoped, tag = 'internal scratch']
  #allocation2 [shape = 's32[1]{0}', space=sflag, size = 0x4, scoped, tag = 'scoped memory for tpu_custom_call.1']
  #allocation3 [shape = 'u8[512]{0}', space=smem, size = 0x200, scoped, tag = 'prefetched SMEM operand 0']
  #allocation4 [shape = 'u8[512]{0}', space=smem, size = 0x200, scoped, tag = 'prefetched SMEM operand 1']
  #allocation5 [shape = 'u8[512]{0}', space=smem, size = 0x200, scoped, tag = 'prefetched SMEM operand 2']
  #allocation6 [shape = 'u8[512]{0}', space=smem, size = 0x200, scoped, tag = 'prefetched SMEM operand 3']
  %s0 = inlined_call_operand.hbm [shape: s32[32], index: 0, kind: input, shape index: {}]
  %s1 = inlined_call_operand.hbm [shape: s32[32], index: 1, kind: input, shape index: {}]
  %s2 = inlined_call_operand.vmem [shape: s32[32], index: 2, kind: input, shape index: {}]
  %s3 = inlined_call_operand.vmem [shape: s32[4], index: 3, kind: input, shape index: {}]
  %s4 = inlined_call_operand.hbm [shape: f32[64,128], index: 4, kind: input, shape index: {}]
  %s5 = inlined_call_operand.hbm [shape: f32[16,128], index: 5, kind: input, shape index: {}]
  %s6 = inlined_call_operand.hbm [shape: f32[2,16,128], index: 6, kind: output, shape index: {}]
  %s7 = sld [smem:[#allocation0]]
  $region56: #{tpu_custom_call.1} parent=0
    _
  %s9 = ssub.s32 1, %s7
  %s10 = scalar_select 0, %s9, %s7
  %s12 = sshll.u32 %s0, 4
  %s13 = int_to_ptr.hbm [resolvable:$true] %s12
  %15 = dma.hbm_to_smem %s13, 16, [#allocation3], [#allocation2]
  %s17 = sshll.u32 %s1, 4
  %s18 = int_to_ptr.hbm [resolvable:$true] %s17
  %20 = dma.hbm_to_smem %s18, 16, [#allocation4], [#allocation2]
  %s22 = sshll.u32 %s2, 4
  %s23 = int_to_ptr.vmem [resolvable:$true] %s22
  %25 = dma.vmem_to_smem %s23, 16, [#allocation5], [#allocation2]
  %s27 = sshll.u32 %s3, 4
  %s28 = int_to_ptr.vmem [resolvable:$true] %s27
  %30 = dma.vmem_to_smem %s28, 16, [#allocation6], [#allocation2]
  %32 = dma.done [#allocation2], 64
  %33 = sfence
  $region1: #{tpu_custom_call.1} parent=0
    #allocation7 [shape = 'u8[32768]{0}', space=vmem, size = 0x8000, scoped, tag = 'input window, operand 4, single buffered']
    #allocation8 [shape = 's32[2]{0}', space=sflag, size = 0x8, scoped, tag = 'scoped memory for tpu_custom_call.1']
    #allocation9 [shape = 's32[2]{0}', space=sflag, size = 0x8, scoped, tag = 'scoped memory for tpu_custom_call.1']
    #allocation10 [shape = 'u8[8192]{0}', space=vmem, size = 0x2000, scoped, tag = 'input window, operand 5, single buffered']
    #allocation11 [shape = 's32[1]{0}', space=sflag, size = 0x4, scoped, tag = 'scoped memory for tpu_custom_call.1']
    #allocation12 [shape = 'u8[8192]{0}', space=vmem, size = 0x2000, scoped, tag = 'output window, operand 0']
    %34 = vsyncpa [#allocation8], 0
    %35 = vsyncpa [#allocation11], 0
    %36 = vsyncpa [#allocation9], 0
    %s37 = scalar_lea.sflag [#allocation9], 1
    %38 = vsyncpa %s37, 0
    loop: start=0, step=1, limit=6
    $region2: #{tpu_custom_call.1} parent=1 // loop_pre_header
      _
    $region3: #{tpu_custom_call.1} parent=1 // loop_header
      %s40 = sphi 0, %s44
      %p41 = scmp.ge.s32.totalorder %s40, 6
      %s47 = sphi 0, %s59
      %s48 = sphi 0, %s55
      %s49 = sphi 0, %s47
      %s50 = sphi 0, %s48
      %s51 = sphi 0, %s49
      %s52 = sphi 0, %s50
      %s60 = sphi 0, %s60
      %s62 = sphi 0, %s60
      %s63 = sphi 0, %s62
      %s77 = sphi 0, %s63
      %s81 = sphi 0, %s81
      %s83 = sphi 0, %s81
      %s84 = sphi 0, %s83
      %s98 = sphi 0, %s84
      %s106 = sphi 0, %s108
      %s109 = sphi 0, %s106
      %s110 = sphi 0, %s109
      %s126 = sphi 0, %s110
    $region4: #{tpu_custom_call.1} parent=1 // loop_header_branch
      %43 = sbr.rel (%p41) target = $region8
    $region5: #{tpu_custom_call.1} parent=1 // loop_body
      %s45 = ssub.s32 %s40, 1
      %s46 = ssub.s32 %s40, 2
      %s53 = sadd.s32 1, %s48
      %p54 = scmp.ge.s32.totalorder %s53, 2
      %s55 = scalar_select %p54, 0, %s53
      %s56 = sadd.s32 1, %s47
      %s57 = scalar_select %p54, %s56, %s47
      %p58 = scmp.ge.s32.totalorder %s57, 2
      %s59 = scalar_select %p58, 0, %s57
      %s61 = sadd.s32 %s60, 1
      %p64 = scmp.eq.s32.totalorder %s40, 3
      %p65 = scmp.ne.s32.totalorder %s60, %s62
      %p66 = scmp.eq.s32.totalorder %s40, 0
      %p67 = por %p65, %p66
      %p68 = scmp.ne.s32.totalorder %s60, %s62
      %p69 = scmp.eq.s32.totalorder %s45, 3
      %p70 = por %p68, %p69
      %p71 = scmp.ne.s32.totalorder %s62, %s63
      %p72 = scmp.eq.s32.totalorder %s45, 0
      %p73 = por %p71, %p72
      %p74 = scmp.ne.s32.totalorder %s62, %s63
      %p75 = scmp.eq.s32.totalorder %s46, 3
      %p76 = por %p74, %p75
      %p78 = scmp.ne.s32.totalorder %s63, %s77
      %p79 = scmp.eq.s32.totalorder %s46, 0
      %p80 = por %p78, %p79
      %s82 = sadd.s32 %s81, 1
      %p85 = scmp.eq.s32.totalorder %s40, 3
      %p86 = scmp.ne.s32.totalorder %s81, %s83
      %p87 = scmp.eq.s32.totalorder %s40, 0
      %p88 = por %p86, %p87
      %p89 = scmp.ne.s32.totalorder %s81, %s83
      %p90 = scmp.eq.s32.totalorder %s45, 3
      %p91 = por %p89, %p90
      %p92 = scmp.ne.s32.totalorder %s83, %s84
      %p93 = scmp.eq.s32.totalorder %s45, 0
      %p94 = por %p92, %p93
      %p95 = scmp.ne.s32.totalorder %s83, %s84
      %p96 = scmp.eq.s32.totalorder %s46, 3
      %p97 = por %p95, %p96
      %p99 = scmp.ne.s32.totalorder %s84, %s98
      %p100 = scmp.eq.s32.totalorder %s46, 0
      %p101 = por %p99, %p100
      %s102 = ssub.s32 %s47, %s59
      %s103 = ssub.s32 %s48, %s55
      %s104 = sor.u32 %s102, %s103
      %p105 = scmp.eq.s32.totalorder %s104, 0
      %s107 = sadd.s32 %s106, 1
      %s108 = scalar_select %p105, %s106, %s107
      %p111 = pneg %p105
      %p112 = scmp.eq.s32.totalorder %s40, 3
      %p113 = por %p111, %p112
      %p114 = scmp.ne.s32.totalorder %s106, %s109
      %p115 = scmp.eq.s32.totalorder %s40, 0
      %p116 = por %p114, %p115
      %p117 = scmp.ne.s32.totalorder %s106, %s109
      %p118 = scmp.eq.s32.totalorder %s45, 3
      %p119 = por %p117, %p118
      %p120 = scmp.ne.s32.totalorder %s109, %s110
      %p121 = scmp.eq.s32.totalorder %s45, 0
      %p122 = por %p120, %p121
      %p123 = scmp.ne.s32.totalorder %s109, %s110
      %p124 = scmp.eq.s32.totalorder %s46, 3
      %p125 = por %p123, %p124
      %p127 = scmp.ne.s32.totalorder %s110, %s126
      %p128 = scmp.eq.s32.totalorder %s46, 0
      %p129 = por %p127, %p128
      %p130 = scmp.le.s32.totalorder 1, %s40
      %p131 = scmp.lt.s32.totalorder %s40, 5
      %p132 = pnand %p130, %p131
      %p133 = pneg %p132
      // Predicated region
      $region9: #{tpu_custom_call.1} parent=5 // pred_check
        _
      $region10: #{tpu_custom_call.1} parent=5 // pred_check_branch
        %135 = sbr.rel (%p132) target = $region12
      $region11: #{tpu_custom_call.1} parent=5 // pred_region
        %s136 = ssub.s32 %s40, 1
        // Predicated region
        $region13: #{tpu_custom_call.1} parent=11 // pred_check
          %p137 = pneg %p73
        $region14: #{tpu_custom_call.1} parent=11 // pred_check_branch
          %139 = sbr.rel (%p137) target = $region16
        $region15: #{tpu_custom_call.1} parent=11 // pred_region
          %141 = vsyncadd [#allocation8], 0
          %s142 = sshll.u32 %s4, 4
          %s143 = int_to_ptr.hbm [resolvable:$true] %s142
          %s144 = sshll.u32 [#allocation7], 4
          %s145 = int_to_ptr.vmem [resolvable:$true] %s144
          %150 = dma.hbm_to_vmem [thread:$0]  %s143, 1024, %s145, [#allocation8], 128, 128, 8
        $region16: #{tpu_custom_call.1} parent=11 // pred_fallthru
          _
        // Predicated region
        $region17: #{tpu_custom_call.1} parent=11 // pred_check
          %p151 = pneg %p94
        $region18: #{tpu_custom_call.1} parent=11 // pred_check_branch
          %153 = sbr.rel (%p151) target = $region20
        $region19: #{tpu_custom_call.1} parent=11 // pred_region
          %155 = vsyncadd [#allocation11], 0
          %s156 = sshll.u32 %s5, 4
          %s157 = int_to_ptr.hbm [resolvable:$true] %s156
          %s158 = sshll.u32 [#allocation10], 4
          %s159 = int_to_ptr.vmem [resolvable:$true] %s158
          %164 = dma.hbm_to_vmem [thread:$0]  %s157, 256, %s159, [#allocation11], 128, 128, 8
        $region20: #{tpu_custom_call.1} parent=11 // pred_fallthru
          _
      $region12: #{tpu_custom_call.1} parent=5 // pred_fallthru
        _
      %p165 = scmp.lt.s32.totalorder %s40, 4
      // Predicated region
      $region21: #{tpu_custom_call.1} parent=5 // pred_check
        %p166 = pneg %p165
      $region22: #{tpu_custom_call.1} parent=5 // pred_check_branch
        %168 = sbr.rel (%p166) target = $region24
      $region23: #{tpu_custom_call.1} parent=5 // pred_region
        _
      $region24: #{tpu_custom_call.1} parent=5 // pred_fallthru
        _
      %p169 = scmp.le.s32.totalorder 1, %s40
      %p170 = scmp.lt.s32.totalorder %s40, 5
      %p171 = pnand %p169, %p170
      %p172 = pneg %p171
      // Predicated region
      $region25: #{tpu_custom_call.1} parent=5 // pred_check
        _
      $region26: #{tpu_custom_call.1} parent=5 // pred_check_branch
        %174 = sbr.rel (%p171) target = $region28
      $region27: #{tpu_custom_call.1} parent=5 // pred_region
        %s175 = ssub.s32 %s40, 1
        // Predicated region
        $region29: #{tpu_custom_call.1} parent=27 // pred_check
          %p176 = pneg %p73
        $region30: #{tpu_custom_call.1} parent=27 // pred_check_branch
          %178 = sbr.rel (%p176) target = $region32
        $region31: #{tpu_custom_call.1} parent=27 // pred_region
          %180 = dma.done [#allocation8], 1024
        $region32: #{tpu_custom_call.1} parent=27 // pred_fallthru
          _
        // Predicated region
        $region33: #{tpu_custom_call.1} parent=27 // pred_check
          %p181 = pneg %p94
        $region34: #{tpu_custom_call.1} parent=27 // pred_check_branch
          %183 = sbr.rel (%p181) target = $region36
        $region35: #{tpu_custom_call.1} parent=27 // pred_region
          %185 = dma.done [#allocation11], 256
        $region36: #{tpu_custom_call.1} parent=27 // pred_fallthru
          _
        %p186 = pneg %p73
        %p187 = pneg %p70
        %p188 = pneg %p94
        %p189 = pneg %p91
        %p190 = pneg %p122
        %p191 = pneg %p119
        %s192 = sand.u32 %s109, 1
        %s193 = scalar_lea.sflag [#allocation9], %s192
        %s194 = sand.u32 %s109, 1
        %s195 = smul.addr %s194, 8
        %s196 = scalar_lea.vmem [#allocation12], %s195
        %s197 = smul.u32 %s49, 2
        %s198 = sadd.s32 %s197, %s50
        %s199 = smul.u32 %s198, 8
        %s200 = sld [smem:[#allocation3 + %s199]]
        %p201 = scmp.gt.s32.totalorder %s200, 0
        %s202 = scalar_select %p201, %s200, 0
        %p203 = scmp.lt.s32.totalorder %s202, 63
        %s204 = scalar_select %p203, %s202, 63
        %s205 = scalar_lea.vmem [#allocation7], %s204
        %v206 = vld [vmem:[%s205] sm:$0x1]
        %207 = vst [vmem:[%s196] sm:$0x1] %v206
        %s208 = sadd.s32 %s199, 1
        %s209 = sld [smem:[#allocation3 + %s208]]
        %p210 = scmp.gt.s32.totalorder %s209, 0
        %s211 = scalar_select %p210, %s209, 0
        %p212 = scmp.lt.s32.totalorder %s211, 63
        %s213 = scalar_select %p212, %s211, 63
        %s214 = scalar_lea.vmem [#allocation7], %s213
        %v215 = vld [vmem:[%s214] sm:$0x1]
        %216 = vst [vmem:[%s196 + $0x1] sm:$0x1] %v215
        %s217 = sadd.s32 %s199, 2
        %s218 = sld [smem:[#allocation3 + %s217]]
        %p219 = scmp.gt.s32.totalorder %s218, 0
        %s220 = scalar_select %p219, %s218, 0
        %p221 = scmp.lt.s32.totalorder %s220, 63
        %s222 = scalar_select %p221, %s220, 63
        %s223 = scalar_lea.vmem [#allocation7], %s222
        %v224 = vld [vmem:[%s223] sm:$0x1]
        %225 = vst [vmem:[%s196 + $0x2] sm:$0x1] %v224
        %s226 = sadd.s32 %s199, 3
        %s227 = sld [smem:[#allocation3 + %s226]]
        %p228 = scmp.gt.s32.totalorder %s227, 0
        %s229 = scalar_select %p228, %s227, 0
        %p230 = scmp.lt.s32.totalorder %s229, 63
        %s231 = scalar_select %p230, %s229, 63
        %s232 = scalar_lea.vmem [#allocation7], %s231
        %v233 = vld [vmem:[%s232] sm:$0x1]
        %234 = vst [vmem:[%s196 + $0x3] sm:$0x1] %v233
        %s235 = sadd.s32 %s199, 4
        %s236 = sld [smem:[#allocation3 + %s235]]
        %p237 = scmp.gt.s32.totalorder %s236, 0
        %s238 = scalar_select %p237, %s236, 0
        %p239 = scmp.lt.s32.totalorder %s238, 63
        %s240 = scalar_select %p239, %s238, 63
        %s241 = scalar_lea.vmem [#allocation7], %s240
        %v242 = vld [vmem:[%s241] sm:$0x1]
        %243 = vst [vmem:[%s196 + $0x4] sm:$0x1] %v242
        %s244 = sadd.s32 %s199, 5
        %s245 = sld [smem:[#allocation3 + %s244]]
        %p246 = scmp.gt.s32.totalorder %s245, 0
        %s247 = scalar_select %p246, %s245, 0
        %p248 = scmp.lt.s32.totalorder %s247, 63
        %s249 = scalar_select %p248, %s247, 63
        %s250 = scalar_lea.vmem [#allocation7], %s249
        %v251 = vld [vmem:[%s250] sm:$0x1]
        %252 = vst [vmem:[%s196 + $0x5] sm:$0x1] %v251
        %s253 = sadd.s32 %s199, 6
        %s254 = sld [smem:[#allocation3 + %s253]]
        %p255 = scmp.gt.s32.totalorder %s254, 0
        %s256 = scalar_select %p255, %s254, 0
        %p257 = scmp.lt.s32.totalorder %s256, 63
        %s258 = scalar_select %p257, %s256, 63
        %s259 = scalar_lea.vmem [#allocation7], %s258
        %v260 = vld [vmem:[%s259] sm:$0x1]
        %261 = vst [vmem:[%s196 + $0x6] sm:$0x1] %v260
        %s262 = sadd.s32 %s199, 7
        %s263 = sld [smem:[#allocation3 + %s262]]
        %p264 = scmp.gt.s32.totalorder %s263, 0
        %s265 = scalar_select %p264, %s263, 0
        %p266 = scmp.lt.s32.totalorder %s265, 63
        %s267 = scalar_select %p266, %s265, 63
        %s268 = scalar_lea.vmem [#allocation7], %s267
        %v269 = vld [vmem:[%s268] sm:$0x1]
        %270 = vst [vmem:[%s196 + $0x7] sm:$0x1] %v269
        %s271 = sld [smem:[#allocation6 + %s198]]
        // While loop
        $region37: #{tpu_custom_call.1} parent=27 // loop_pre_header
          _
        $region38: #{tpu_custom_call.1} parent=27 // loop_header
          %s273 = sphi 0, %s275
          %p274 = scmp.ge.s32.totalorder %s273, %s271
        $region39: #{tpu_custom_call.1} parent=27 // loop_header_branch
          %277 = sbr.rel (%p274) target = $region43
        $region40: #{tpu_custom_call.1} parent=27 // loop_body
          %s278 = sadd.s32 %s199, %s273
          %s279 = sld [smem:[#allocation4 + %s278]]
          %s280 = sld [smem:[#allocation5 + %s278]]
          %s281 = scalar_lea.vmem [#allocation10], %s280
          %v282 = vld [vmem:[%s281] sm:$0x1]
          %s283 = scalar_lea.vmem %s196, %s279 [#allocation12]
          %284 = vst [vmem:[%s283] sm:$0x1] %v282
        $region41: #{tpu_custom_call.1} parent=27 // loop_footer
          %s275 = sadd.s32 %s273, 1
        $region42: #{tpu_custom_call.1} parent=27 // loop_footer_branch
          %272 = sbr.rel target = $region38
        $region43: #{tpu_custom_call.1} parent=27 // loop_exit
          _
        %s285 = sand.u32 %s109, 1
        %s286 = scalar_lea.sflag [#allocation9], %s285
        %s287 = sand.u32 %s109, 1
        %s288 = smul.addr %s287, 8
        %s289 = scalar_lea.vmem [#allocation12], %s288
        // Predicated region
        $region44: #{tpu_custom_call.1} parent=27 // pred_check
          %p290 = pneg %p119
        $region45: #{tpu_custom_call.1} parent=27 // pred_check_branch
          %292 = sbr.rel (%p290) target = $region47
        $region46: #{tpu_custom_call.1} parent=27 // pred_region
          %294 = vsyncadd %s286, 0
          %s295 = smul.addr %s49, 2
          %s296 = sadd.s32 %s50, %s295
          %s297 = smul.addr %s296, 8
          %s298 = scalar_lea.hbm %s6, %s297
          %s300 = sshll.u32 %s289, 4
          %s301 = int_to_ptr.vmem [resolvable:$true] %s300
          %s302 = sshll.u32 %s298, 4
          %s303 = int_to_ptr.hbm [resolvable:$true] %s302
          %305 = dma.vmem_to_hbm [thread:$0]  %s301, 128, %s303, %s286
        $region47: #{tpu_custom_call.1} parent=27 // pred_fallthru
          _
      $region28: #{tpu_custom_call.1} parent=5 // pred_fallthru
        _
      %p306 = scmp.le.s32.totalorder 2, %s40
      // Predicated region
      $region48: #{tpu_custom_call.1} parent=5 // pred_check
        %p307 = pneg %p306
      $region49: #{tpu_custom_call.1} parent=5 // pred_check_branch
        %309 = sbr.rel (%p307) target = $region51
      $region50: #{tpu_custom_call.1} parent=5 // pred_region
        %s310 = ssub.s32 %s40, 2
        // Predicated region
        $region52: #{tpu_custom_call.1} parent=50 // pred_check
          %p311 = pneg %p125
        $region53: #{tpu_custom_call.1} parent=50 // pred_check_branch
          %313 = sbr.rel (%p311) target = $region55
        $region54: #{tpu_custom_call.1} parent=50 // pred_region
          %s314 = sand.u32 %s110, 1
          %s315 = scalar_lea.sflag [#allocation9], %s314
          %s316 = sand.u32 %s110, 1
          %s317 = smul.addr %s316, 8
          %s318 = scalar_lea.vmem [#allocation12], %s317
          %320 = dma.done %s315, 128
        $region55: #{tpu_custom_call.1} parent=50 // pred_fallthru
          _
      $region51: #{tpu_custom_call.1} parent=5 // pred_fallthru
        _
    $region6: #{tpu_custom_call.1} parent=1 // loop_footer
      %s44 = sadd.s32 1, %s40
    $region7: #{tpu_custom_call.1} parent=1 // loop_footer_branch
      %39 = sbr.rel target = $region3
    $region8: #{tpu_custom_call.1} parent=1 // loop_exit
      _
    %321 = vsyncpa [#allocation8], 1
    %s322 = scalar_lea.sflag [#allocation8], 1
    %323 = vsyncpa %s322, 1
    %324 = vsyncpa [#allocation11], 1
    %325 = vsyncpa [#allocation9], 1
    %s326 = scalar_lea.sflag [#allocation9], 1
    %327 = vsyncpa %s326, 1

</llo_original>
